<compile_context>
chip_gen: v7x
topology: tpu7x:2x2x1
jax: 0.10.0
libtpu: 0.0.40
codegen_flags: <defaults>
</compile_context>

<pallas_src>
import functools

import jax
import jax.numpy as jnp
from jax import lax
from jax.experimental import pallas as pl
from jax.experimental.pallas import tpu as pltpu  # noqa: F401  (TPU backend)


def _linear_kernel(x_ref, w_ref, b_ref, o_ref):
    """y = x @ W^T + b in a single shot.

    x_ref: (B, K)   flattened activations
    w_ref: (N, K)   weight, PyTorch layout (untransposed)
    b_ref: (1, N)   bias
    o_ref: (B, N)   output
    """
    # Contract last dim of x with last dim of W  ->  (B, N), f32 accumulate.
    y = lax.dot_general(
        x_ref[...],
        w_ref[...],
        dimension_numbers=(((1,), (1,)), ((), ())),
        preferred_element_type=jnp.float32,
    )
    o_ref[...] = (y + b_ref[...]).astype(o_ref.dtype)


@jax.jit
def frozen_cnn_forward(x, weight, bias):
    """x: (B, C, H, W) float32; weight: (N, K); bias: (N,). Returns (B, N)."""
    B = x.shape[0]
    x_flat = x.reshape(B, -1)          # glue: the .view() from forward()
    K = x_flat.shape[1]
    N, Kw = weight.shape
    assert K == Kw, "flattened feature size must match weight's in_features"

    b2 = bias.reshape(1, N)

    # No grid: whole arrays are single VMEM-resident blocks.
    return pl.pallas_call(
        _linear_kernel,
        out_shape=jax.ShapeDtypeStruct((B, N), x.dtype),
        in_specs=[
            pl.BlockSpec((B, K), lambda: (0, 0)),   # activations
            pl.BlockSpec((N, K), lambda: (0, 0)),   # weight, (N, K) lane-dense
            pl.BlockSpec((1, N), lambda: (0, 0)),   # bias
        ],
        out_specs=pl.BlockSpec((B, N), lambda: (0, 0)),
    )(x_flat, weight, b2)


if __name__ == "__main__":
    # Module defaults: features_size=2048, num_classes=17.
    # Small input consistent with that: B=2, C=8, H=W=16 -> 8*16*16 = 2048.
    B, C, H, W = 2, 8, 16, 16
    features_size = C * H * W                  # 2048
    num_classes = 17

    key = jax.random.PRNGKey(0)
    kx, kw = jax.random.split(key)

    x = jax.random.normal(kx, (B, C, H, W), dtype=jnp.float32)
    # _initialize_weights: weight ~ N(0, 0.01), bias = 0
    weight = 0.01 * jax.random.normal(
        kw, (num_classes, features_size), dtype=jnp.float32
    )
    bias = jnp.zeros((num_classes,), dtype=jnp.float32)

    out = frozen_cnn_forward(x, weight, bias)
    jax.block_until_ready(out)

    # Correctness check against plain-JAX reference of the PyTorch forward.
    ref = x.reshape(B, -1) @ weight.T + bias
    assert out.shape == (B, num_classes)
    assert jnp.allclose(out, ref, atol=1e-4, rtol=1e-4)

    print("KERNEL_OK")
</pallas_src>

<mosaic_0001>
module attributes {stable_mosaic.version = 11 : i64} {
  func.func @_linear_kernel(%arg0: memref<2x2048xf32, #tpu.memory_space<vmem>>, %arg1: memref<17x2048xf32, #tpu.memory_space<vmem>>, %arg2: memref<1x17xf32, #tpu.memory_space<vmem>>, %arg3: memref<2x17xf32, #tpu.memory_space<vmem>>) attributes {dimension_semantics = [], scalar_prefetch = 0 : i64, scratch_operands = 0 : i64, tpu.core_type = #tpu.core_type<tc>} {
    %c0 = arith.constant 0 : index
    %c0_0 = arith.constant 0 : index
    %0 = vector.load %arg0[%c0, %c0_0] : memref<2x2048xf32, #tpu.memory_space<vmem>>, vector<2x2048xf32>
    %c0_1 = arith.constant 0 : index
    %c0_2 = arith.constant 0 : index
    %1 = vector.load %arg1[%c0_1, %c0_2] : memref<17x2048xf32, #tpu.memory_space<vmem>>, vector<17x2048xf32>
    %cst = arith.constant dense<0.000000e+00> : vector<2x17xf32>
    %2 = tpu.matmul %0, %1, %cst {dimension_numbers = #tpu.dot_dimension_numbers<[1], [1], [0], [0], [0, 0, 1, 0], [], []>} : vector<2x2048xf32>, vector<17x2048xf32>, vector<2x17xf32> -> vector<2x17xf32>
    %c0_3 = arith.constant 0 : index
    %c0_4 = arith.constant 0 : index
    %3 = vector.load %arg2[%c0_3, %c0_4] : memref<1x17xf32, #tpu.memory_space<vmem>>, vector<1x17xf32>
    %4 = vector.broadcast %3 : vector<1x17xf32> to vector<2x17xf32>
    %5 = arith.addf %2, %4 : vector<2x17xf32>
    %c0_5 = arith.constant 0 : index
    %c0_6 = arith.constant 0 : index
    %6 = vector.load %arg3[%c0_5, %c0_6] : memref<2x17xf32, #tpu.memory_space<vmem>>, vector<2x17xf32>
    tpu.vector_store %arg3[%c0_5, %c0_6], %5 {strides = array<i32>} : memref<2x17xf32, #tpu.memory_space<vmem>>, vector<2x17xf32>,
    return
  }
}

</mosaic_0001>

<llo_original>
// kernel: frozen_cnn_forward.1
$region0: #{frozen_cnn_forward.1}
  #allocation0 [shape = 'u32[]', space=smem, size = 0x4, offset = 0x4, fixed_abs, tag = 'smem constant byte address 0x4 - core index']
  #allocation1 [shape = 'u32[144,128]{1,0:T(1,128)}', space=vmem, size = 0x12000, scoped, tag = 'internal scratch']
  %s0 = inlined_call_operand.vmem [shape: f32[2,2048], index: 0, kind: input, shape index: {}]
  %s1 = inlined_call_operand.hbm [shape: f32[17,2048], index: 1, kind: input, shape index: {}]
  %s2 = inlined_call_operand.vmem [shape: f32[1,17], index: 2, kind: input, shape index: {}]
  %s3 = inlined_call_operand.hbm [shape: f32[2,17], index: 3, kind: output, shape index: {}]
  %s4 = sld [smem:[#allocation0]]
  $region26: #{frozen_cnn_forward.1} parent=0
    _
  %s6 = ssub.s32 1, %s4
  %s7 = scalar_select 0, %s6, %s4
  $region1: #{frozen_cnn_forward.1} parent=0
    #allocation2 [shape = 'u8[196608]{0}', space=vmem, size = 0x30000, scoped, tag = 'input window, operand 1, single buffered']
    #allocation3 [shape = 's32[1]{0}', space=sflag, size = 0x4, scoped, tag = 'scoped memory for frozen_cnn_forward.1']
    #allocation4 [shape = 's32[1]{0}', space=sflag, size = 0x4, scoped, tag = 'scoped memory for frozen_cnn_forward.1']
    #allocation5 [shape = 'u8[1024]{0}', space=vmem, size = 0x400, scoped, tag = 'output window, operand 0, single buffered']
    %8 = vsyncpa [#allocation3], 0
    %9 = vsyncpa [#allocation4], 0
    // Predicated region
    $region2: #{frozen_cnn_forward.1} parent=1 // pred_check
      _
    $region3: #{frozen_cnn_forward.1} parent=1 // pred_check_branch
      %11 = sbr.rel (0) target = $region5
    $region4: #{frozen_cnn_forward.1} parent=1 // pred_region
      _
    $region5: #{frozen_cnn_forward.1} parent=1 // pred_fallthru
      _
    // Predicated region
    $region6: #{frozen_cnn_forward.1} parent=1 // pred_check
      _
    $region7: #{frozen_cnn_forward.1} parent=1 // pred_check_branch
      %13 = sbr.rel (0) target = $region9
    $region8: #{frozen_cnn_forward.1} parent=1 // pred_region
      %s15 = ssub.s32 6144, 6144
      %16 = vsyncadd [#allocation3], %s15
      %s17 = sshll.u32 [#allocation2], 4
      %s18 = int_to_ptr.vmem [resolvable:$true] %s17
      %23 = dma.hbm_to_vmem [thread:$0]  %s1, 6144, %s18, [#allocation3], 2048, 2048, 128
    $region9: #{frozen_cnn_forward.1} parent=1 // pred_fallthru
      _
    // Predicated region
    $region10: #{frozen_cnn_forward.1} parent=1 // pred_check
      _
    $region11: #{frozen_cnn_forward.1} parent=1 // pred_check_branch
      %25 = sbr.rel (0) target = $region13
    $region12: #{frozen_cnn_forward.1} parent=1 // pred_region
      _
    $region13: #{frozen_cnn_forward.1} parent=1 // pred_fallthru
      _
    // Predicated region
    $region14: #{frozen_cnn_forward.1} parent=1 // pred_check
      _
    $region15: #{frozen_cnn_forward.1} parent=1 // pred_check_branch
      %27 = sbr.rel (0) target = $region17
    $region16: #{frozen_cnn_forward.1} parent=1 // pred_region
      %28 = dma.done [#allocation3], 6144
    $region17: #{frozen_cnn_forward.1} parent=1 // pred_fallthru
      _
    %v29 = vld [vmem:[%s0] sm:$0xff]
    %v30 = vld [vmem:[%s0 + $0x8] sm:$0xff]
    %v31 = vld [vmem:[%s0 + $0x10] sm:$0xff]
    %v32 = vld [vmem:[%s0 + $0x18] sm:$0xff]
    %v33 = vld [vmem:[#allocation2] sm:$0xff]
    %v34 = vld [vmem:[#allocation2 + $0x8] sm:$0xff]
    %v35 = vld [vmem:[#allocation2 + $0x10] sm:$0xff]
    %v36 = vld [vmem:[#allocation2 + $0x18] sm:$0xff]
    %v37 = vld [vmem:[#allocation2 + $0x20] sm:$0xff]
    %v38 = vld [vmem:[#allocation2 + $0x28] sm:$0xff]
    %v39 = vld [vmem:[#allocation2 + $0x30] sm:$0xff]
    %v40 = vld [vmem:[#allocation2 + $0x38] sm:$0xff]
    %v41 = vld [vmem:[#allocation2 + $0x40] sm:$0xff]
    %v42 = vld [vmem:[#allocation2 + $0x48] sm:$0xff]
    %v43 = vld [vmem:[#allocation2 + $0x50] sm:$0xff]
    %v44 = vld [vmem:[#allocation2 + $0x58] sm:$0xff]
    %v45 = vld [vmem:[#allocation2 + $0x60] sm:$0xff]
    %v46 = vld [vmem:[#allocation2 + $0x68] sm:$0xff]
    %v47 = vld [vmem:[#allocation2 + $0x70] sm:$0xff]
    %v48 = vld [vmem:[#allocation2 + $0x78] sm:$0xff]
    %v49 = vld [vmem:[#allocation2 + $0x80] sm:$0xff]
    %v50 = vld [vmem:[#allocation2 + $0x88] sm:$0xff]
    %v51 = vld [vmem:[#allocation2 + $0x90] sm:$0xff]
    %v52 = vld [vmem:[#allocation2 + $0x98] sm:$0xff]
    %v53 = vld [vmem:[#allocation2 + $0xa0] sm:$0xff]
    %v54 = vld [vmem:[#allocation2 + $0xa8] sm:$0xff]
    %v55 = vld [vmem:[#allocation2 + $0xb0] sm:$0xff]
    %v56 = vld [vmem:[#allocation2 + $0xb8] sm:$0xff]
    %v57 = vld [vmem:[#allocation2 + $0xc0] sm:$0xff]
    %v58 = vld [vmem:[#allocation2 + $0xc8] sm:$0xff]
    %v59 = vld [vmem:[#allocation2 + $0xd0] sm:$0xff]
    %v60 = vld [vmem:[#allocation2 + $0xd8] sm:$0xff]
    %v61 = vld [vmem:[#allocation2 + $0xe0] sm:$0xff]
    %v62 = vld [vmem:[#allocation2 + $0xe8] sm:$0xff]
    %v63 = vld [vmem:[#allocation2 + $0xf0] sm:$0xff]
    %v64 = vld [vmem:[#allocation2 + $0xf8] sm:$0xff]
    %v65 = vld [vmem:[#allocation2 + $0x100] sm:$0x1]
    %v66 = vld [vmem:[#allocation2 + $0x108] sm:$0x1]
    %v67 = vld [vmem:[#allocation2 + $0x110] sm:$0x1]
    %v68 = vld [vmem:[#allocation2 + $0x118] sm:$0x1]
    %v69 = vld [vmem:[#allocation2 + $0x120] sm:$0x1]
    %v70 = vld [vmem:[#allocation2 + $0x128] sm:$0x1]
    %v71 = vld [vmem:[#allocation2 + $0x130] sm:$0x1]
    %v72 = vld [vmem:[#allocation2 + $0x138] sm:$0x1]
    %v73 = vld [vmem:[#allocation2 + $0x140] sm:$0x1]
    %v74 = vld [vmem:[#allocation2 + $0x148] sm:$0x1]
    %v75 = vld [vmem:[#allocation2 + $0x150] sm:$0x1]
    %v76 = vld [vmem:[#allocation2 + $0x158] sm:$0x1]
    %v77 = vld [vmem:[#allocation2 + $0x160] sm:$0x1]
    %v78 = vld [vmem:[#allocation2 + $0x168] sm:$0x1]
    %v79 = vld [vmem:[#allocation2 + $0x170] sm:$0x1]
    %v80 = vld [vmem:[#allocation2 + $0x178] sm:$0x1]
    %v81 = vld [vmem:[%s2] sm:$0x1]
    %v83 = vlaneseq
    %v84 = vshrl.u32 %v83, 7
    %v85 = vsub.s32 0, %v84
    %v86 = vrot.slane %v81, %v85
    %v92 = vcombine.high %v29, %v29
    %v94 = vunpack.c.l.s4 1983009808
    %v95 = vunpack.c.0.s8 %v94
    %v96 = vlaneseq
    %v97 = vshrl.u32 %v96, 7
    %v98 = vsub.s32 %v95, %v97
    %v99 = vrot.slane %v29, %v98
    %v101 = vunpack.c.l.s4 1983009808
    %v102 = vunpack.c.0.s8 %v101
    %v103 = vlaneseq
    %v104 = vshrl.u32 %v103, 7
    %v105 = vsub.s32 %v102, %v104
    %v106 = vrot.slane %v92, %v105
    %v107 = vcombine.high %v99, %v99
    %v108 = vcombine.high %v106, %v106
    %v109 = vcombine.high %v30, %v30
    %v111 = vunpack.c.l.s4 1983009808
    %v112 = vunpack.c.0.s8 %v111
    %v113 = vlaneseq
    %v114 = vshrl.u32 %v113, 7
    %v115 = vsub.s32 %v112, %v114
    %v116 = vrot.slane %v30, %v115
    %v118 = vunpack.c.l.s4 1983009808
    %v119 = vunpack.c.0.s8 %v118
    %v120 = vlaneseq
    %v121 = vshrl.u32 %v120, 7
    %v122 = vsub.s32 %v119, %v121
    %v123 = vrot.slane %v109, %v122
    %v124 = vcombine.high %v116, %v116
    %v125 = vcombine.high %v123, %v123
    %v126 = vcombine.high %v31, %v31
    %v128 = vunpack.c.l.s4 1983009808
    %v129 = vunpack.c.0.s8 %v128
    %v130 = vlaneseq
    %v131 = vshrl.u32 %v130, 7
    %v132 = vsub.s32 %v129, %v131
    %v133 = vrot.slane %v31, %v132
    %v135 = vunpack.c.l.s4 1983009808
    %v136 = vunpack.c.0.s8 %v135
    %v137 = vlaneseq
    %v138 = vshrl.u32 %v137, 7
    %v139 = vsub.s32 %v136, %v138
    %v140 = vrot.slane %v126, %v139
    %v141 = vcombine.high %v133, %v133
    %v142 = vcombine.high %v140, %v140
    %v143 = vcombine.high %v32, %v32
    %v145 = vunpack.c.l.s4 1983009808
    %v146 = vunpack.c.0.s8 %v145
    %v147 = vlaneseq
    %v148 = vshrl.u32 %v147, 7
    %v149 = vsub.s32 %v146, %v148
    %v150 = vrot.slane %v32, %v149
    %v152 = vunpack.c.l.s4 1983009808
    %v153 = vunpack.c.0.s8 %v152
    %v154 = vlaneseq
    %v155 = vshrl.u32 %v154, 7
    %v156 = vsub.s32 %v153, %v155
    %v157 = vrot.slane %v143, %v156
    %v158 = vcombine.high %v150, %v150
    %v159 = vcombine.high %v157, %v157
    %176 = vmatprep.subr.mxu0 %v34
    %177 = vmatpush1.xpose.msra.mxu0 %v33
    %178 = vmatprep.subr.mxu0 %v50
    %179 = vmatpush1.xpose.msra.mxu0 %v49
    %180 = vmatprep.subr.mxu0 %v66
    %181 = vmatpush1.xpose.msra.mxu0 %v65
    %182 = vmatprep.subr.mxu0 0.0
    %183 = vmatpush1.xpose.msra.mxu0 0.0
    %184 = vmatprep.subr.mxu0 0.0
    %185 = vmatpush1.xpose.msra.mxu0 0.0
    %186 = vmatprep.subr.mxu0 0.0
    %187 = vmatpush1.xpose.msra.mxu0 0.0
    %188 = vmatprep.subr.mxu0 0.0
    %189 = vmatpush1.xpose.msra.mxu0 0.0
    %190 = vmatprep.subr.mxu0 0.0
    %191 = vmatpush1.xpose.msra.mxu0 0.0
    %192 = vmatprep.subr.mxu0 0.0
    %193 = vmatpush1.xpose.msra.mxu0 0.0
    %194 = vmatprep.subr.mxu0 0.0
    %195 = vmatpush1.xpose.msra.mxu0 0.0
    %196 = vmatprep.subr.mxu0 0.0
    %197 = vmatpush1.xpose.msra.mxu0 0.0
    %198 = vmatprep.subr.mxu0 0.0
    %199 = vmatpush1.xpose.msra.mxu0 0.0
    %200 = vmatprep.subr.mxu0 0.0
    %201 = vmatpush1.xpose.msra.mxu0 0.0
    %202 = vmatprep.subr.mxu0 0.0
    %203 = vmatpush1.xpose.msra.mxu0 0.0
    %204 = vmatprep.subr.mxu0 0.0
    %205 = vmatpush1.xpose.msra.mxu0 0.0
    %206 = vmatprep.subr.mxu0 0.0
    %207 = vmatpush1.xpose.msra.mxu0 0.0
    %208 = vmatprep.subr.mxu0 0.0
    %209 = vmatpush1.xpose.msra.mxu0 0.0
    %210 = vmatprep.subr.mxu0 0.0
    %211 = vmatpush1.xpose.msra.mxu0 0.0
    %212 = vmatprep.subr.mxu0 0.0
    %213 = vmatpush1.xpose.msra.mxu0 0.0
    %214 = vmatprep.subr.mxu0 0.0
    %215 = vmatpush1.xpose.msra.mxu0 0.0
    %216 = vmatprep.subr.mxu0 0.0
    %217 = vmatpush1.xpose.msra.mxu0 0.0
    %218 = vmatprep.subr.mxu0 0.0
    %219 = vmatpush1.xpose.msra.mxu0 0.0
    %220 = vmatprep.subr.mxu0 0.0
    %221 = vmatpush1.xpose.msra.mxu0 0.0
    %222 = vmatprep.subr.mxu0 0.0
    %223 = vmatpush1.xpose.msra.mxu0 0.0
    %224 = vmatprep.subr.mxu0 0.0
    %225 = vmatpush1.xpose.msra.mxu0 0.0
    %226 = vmatprep.subr.mxu0 0.0
    %227 = vmatpush1.xpose.msra.mxu0 0.0
    %228 = vmatprep.subr.mxu0 0.0
    %229 = vmatpush1.xpose.msra.mxu0 0.0
    %230 = vmatprep.subr.mxu0 0.0
    %231 = vmatpush1.xpose.msra.mxu0 0.0
    %232 = vmatprep.subr.mxu0 0.0
    %233 = vmatpush1.xpose.msra.mxu0 0.0
    %234 = vmatprep.subr.mxu0 0.0
    %235 = vmatpush1.xpose.msra.mxu0 0.0
    %236 = vmatprep.subr.mxu0 0.0
    %237 = vmatpush1.xpose.msra.mxu0 0.0
    %238 = vmatprep.subr.mxu0 0.0
    %239 = vmatpush1.xpose.msra.mxu0 0.0
    %240 = vmatprep.mubr.f32.mxu0 %v107
    %241 = vmatmul.mubr.f32.gmra.mrb[0].mxu0 %v99
    %v242 = vpop.f32.mrb[0].mxu0
    %v243 = vadd.f32 %v86, %v242
    %v244 = vpop.f32.mrb[0].mxu0
    %245 = vdwg.mxu0
    %246 = vmatprep.subr.mxu0 %v36
    %247 = vmatpush1.xpose.msra.mxu0 %v35
    %248 = vmatprep.subr.mxu0 %v52
    %249 = vmatpush1.xpose.msra.mxu0 %v51
    %250 = vmatprep.subr.mxu0 %v68
    %251 = vmatpush1.xpose.msra.mxu0 %v67
    %252 = vmatprep.subr.mxu0 0.0
    %253 = vmatpush1.xpose.msra.mxu0 0.0
    %254 = vmatprep.subr.mxu0 0.0
    %255 = vmatpush1.xpose.msra.mxu0 0.0
    %256 = vmatprep.subr.mxu0 0.0
    %257 = vmatpush1.xpose.msra.mxu0 0.0
    %258 = vmatprep.subr.mxu0 0.0
    %259 = vmatpush1.xpose.msra.mxu0 0.0
    %260 = vmatprep.subr.mxu0 0.0
    %261 = vmatpush1.xpose.msra.mxu0 0.0
    %262 = vmatprep.subr.mxu0 0.0
    %263 = vmatpush1.xpose.msra.mxu0 0.0
    %264 = vmatprep.subr.mxu0 0.0
    %265 = vmatpush1.xpose.msra.mxu0 0.0
    %266 = vmatprep.subr.mxu0 0.0
    %267 = vmatpush1.xpose.msra.mxu0 0.0
    %268 = vmatprep.subr.mxu0 0.0
    %269 = vmatpush1.xpose.msra.mxu0 0.0
    %270 = vmatprep.subr.mxu0 0.0
    %271 = vmatpush1.xpose.msra.mxu0 0.0
    %272 = vmatprep.subr.mxu0 0.0
    %273 = vmatpush1.xpose.msra.mxu0 0.0
    %274 = vmatprep.subr.mxu0 0.0
    %275 = vmatpush1.xpose.msra.mxu0 0.0
    %276 = vmatprep.subr.mxu0 0.0
    %277 = vmatpush1.xpose.msra.mxu0 0.0
    %278 = vmatprep.subr.mxu0 0.0
    %279 = vmatpush1.xpose.msra.mxu0 0.0
    %280 = vmatprep.subr.mxu0 0.0
    %281 = vmatpush1.xpose.msra.mxu0 0.0
    %282 = vmatprep.subr.mxu0 0.0
    %283 = vmatpush1.xpose.msra.mxu0 0.0
    %284 = vmatprep.subr.mxu0 0.0
    %285 = vmatpush1.xpose.msra.mxu0 0.0
    %286 = vmatprep.subr.mxu0 0.0
    %287 = vmatpush1.xpose.msra.mxu0 0.0
    %288 = vmatprep.subr.mxu0 0.0
    %289 = vmatpush1.xpose.msra.mxu0 0.0
    %290 = vmatprep.subr.mxu0 0.0
    %291 = vmatpush1.xpose.msra.mxu0 0.0
    %292 = vmatprep.subr.mxu0 0.0
    %293 = vmatpush1.xpose.msra.mxu0 0.0
    %294 = vmatprep.subr.mxu0 0.0
    %295 = vmatpush1.xpose.msra.mxu0 0.0
    %296 = vmatprep.subr.mxu0 0.0
    %297 = vmatpush1.xpose.msra.mxu0 0.0
    %298 = vmatprep.subr.mxu0 0.0
    %299 = vmatpush1.xpose.msra.mxu0 0.0
    %300 = vmatprep.subr.mxu0 0.0
    %301 = vmatpush1.xpose.msra.mxu0 0.0
    %302 = vmatprep.subr.mxu0 0.0
    %303 = vmatpush1.xpose.msra.mxu0 0.0
    %304 = vmatprep.subr.mxu0 0.0
    %305 = vmatpush1.xpose.msra.mxu0 0.0
    %306 = vmatprep.subr.mxu0 0.0
    %307 = vmatpush1.xpose.msra.mxu0 0.0
    %308 = vmatprep.subr.mxu0 0.0
    %309 = vmatpush1.xpose.msra.mxu0 0.0
    %310 = vmatprep.mubr.f32.mxu0 %v108
    %311 = vmatmul.mubr.f32.gmra.mrb[0].mxu0 %v106
    %v312 = vpop.f32.mrb[0].mxu0
    %v313 = vadd.f32 %v243, %v312
    %v314 = vpop.f32.mrb[0].mxu0
    %315 = vdwg.mxu0
    %316 = vmatprep.subr.mxu0 %v38
    %317 = vmatpush1.xpose.msra.mxu0 %v37
    %318 = vmatprep.subr.mxu0 %v54
    %319 = vmatpush1.xpose.msra.mxu0 %v53
    %320 = vmatprep.subr.mxu0 %v70
    %321 = vmatpush1.xpose.msra.mxu0 %v69
    %322 = vmatprep.subr.mxu0 0.0
    %323 = vmatpush1.xpose.msra.mxu0 0.0
    %324 = vmatprep.subr.mxu0 0.0
    %325 = vmatpush1.xpose.msra.mxu0 0.0
    %326 = vmatprep.subr.mxu0 0.0
    %327 = vmatpush1.xpose.msra.mxu0 0.0
    %328 = vmatprep.subr.mxu0 0.0
    %329 = vmatpush1.xpose.msra.mxu0 0.0
    %330 = vmatprep.subr.mxu0 0.0
    %331 = vmatpush1.xpose.msra.mxu0 0.0
    %332 = vmatprep.subr.mxu0 0.0
    %333 = vmatpush1.xpose.msra.mxu0 0.0
    %334 = vmatprep.subr.mxu0 0.0
    %335 = vmatpush1.xpose.msra.mxu0 0.0
    %336 = vmatprep.subr.mxu0 0.0
    %337 = vmatpush1.xpose.msra.mxu0 0.0
    %338 = vmatprep.subr.mxu0 0.0
    %339 = vmatpush1.xpose.msra.mxu0 0.0
    %340 = vmatprep.subr.mxu0 0.0
    %341 = vmatpush1.xpose.msra.mxu0 0.0
    %342 = vmatprep.subr.mxu0 0.0
    %343 = vmatpush1.xpose.msra.mxu0 0.0
    %344 = vmatprep.subr.mxu0 0.0
    %345 = vmatpush1.xpose.msra.mxu0 0.0
    %346 = vmatprep.subr.mxu0 0.0
    %347 = vmatpush1.xpose.msra.mxu0 0.0
    %348 = vmatprep.subr.mxu0 0.0
    %349 = vmatpush1.xpose.msra.mxu0 0.0
    %350 = vmatprep.subr.mxu0 0.0
    %351 = vmatpush1.xpose.msra.mxu0 0.0
    %352 = vmatprep.subr.mxu0 0.0
    %353 = vmatpush1.xpose.msra.mxu0 0.0
    %354 = vmatprep.subr.mxu0 0.0
    %355 = vmatpush1.xpose.msra.mxu0 0.0
    %356 = vmatprep.subr.mxu0 0.0
    %357 = vmatpush1.xpose.msra.mxu0 0.0
    %358 = vmatprep.subr.mxu0 0.0
    %359 = vmatpush1.xpose.msra.mxu0 0.0
    %360 = vmatprep.subr.mxu0 0.0
    %361 = vmatpush1.xpose.msra.mxu0 0.0
    %362 = vmatprep.subr.mxu0 0.0
    %363 = vmatpush1.xpose.msra.mxu0 0.0
    %364 = vmatprep.subr.mxu0 0.0
    %365 = vmatpush1.xpose.msra.mxu0 0.0
    %366 = vmatprep.subr.mxu0 0.0
    %367 = vmatpush1.xpose.msra.mxu0 0.0
    %368 = vmatprep.subr.mxu0 0.0
    %369 = vmatpush1.xpose.msra.mxu0 0.0
    %370 = vmatprep.subr.mxu0 0.0
    %371 = vmatpush1.xpose.msra.mxu0 0.0
    %372 = vmatprep.subr.mxu0 0.0
    %373 = vmatpush1.xpose.msra.mxu0 0.0
    %374 = vmatprep.subr.mxu0 0.0
    %375 = vmatpush1.xpose.msra.mxu0 0.0
    %376 = vmatprep.subr.mxu0 0.0
    %377 = vmatpush1.xpose.msra.mxu0 0.0
    %378 = vmatprep.subr.mxu0 0.0
    %379 = vmatpush1.xpose.msra.mxu0 0.0
    %380 = vmatprep.mubr.f32.mxu0 %v124
    %381 = vmatmul.mubr.f32.gmra.mrb[0].mxu0 %v116
    %v382 = vpop.f32.mrb[0].mxu0
    %v383 = vadd.f32 %v313, %v382
    %v384 = vpop.f32.mrb[0].mxu0
    %385 = vdwg.mxu0
    %386 = vmatprep.subr.mxu0 %v40
    %387 = vmatpush1.xpose.msra.mxu0 %v39
    %388 = vmatprep.subr.mxu0 %v56
    %389 = vmatpush1.xpose.msra.mxu0 %v55
    %390 = vmatprep.subr.mxu0 %v72
    %391 = vmatpush1.xpose.msra.mxu0 %v71
    %392 = vmatprep.subr.mxu0 0.0
    %393 = vmatpush1.xpose.msra.mxu0 0.0
    %394 = vmatprep.subr.mxu0 0.0
    %395 = vmatpush1.xpose.msra.mxu0 0.0
    %396 = vmatprep.subr.mxu0 0.0
    %397 = vmatpush1.xpose.msra.mxu0 0.0
    %398 = vmatprep.subr.mxu0 0.0
    %399 = vmatpush1.xpose.msra.mxu0 0.0
    %400 = vmatprep.subr.mxu0 0.0
    %401 = vmatpush1.xpose.msra.mxu0 0.0
    %402 = vmatprep.subr.mxu0 0.0
    %403 = vmatpush1.xpose.msra.mxu0 0.0
    %404 = vmatprep.subr.mxu0 0.0
    %405 = vmatpush1.xpose.msra.mxu0 0.0
    %406 = vmatprep.subr.mxu0 0.0
    %407 = vmatpush1.xpose.msra.mxu0 0.0
    %408 = vmatprep.subr.mxu0 0.0
    %409 = vmatpush1.xpose.msra.mxu0 0.0
    %410 = vmatprep.subr.mxu0 0.0
    %411 = vmatpush1.xpose.msra.mxu0 0.0
    %412 = vmatprep.subr.mxu0 0.0
    %413 = vmatpush1.xpose.msra.mxu0 0.0
    %414 = vmatprep.subr.mxu0 0.0
    %415 = vmatpush1.xpose.msra.mxu0 0.0
    %416 = vmatprep.subr.mxu0 0.0
    %417 = vmatpush1.xpose.msra.mxu0 0.0
    %418 = vmatprep.subr.mxu0 0.0
    %419 = vmatpush1.xpose.msra.mxu0 0.0
    %420 = vmatprep.subr.mxu0 0.0
    %421 = vmatpush1.xpose.msra.mxu0 0.0
    %422 = vmatprep.subr.mxu0 0.0
    %423 = vmatpush1.xpose.msra.mxu0 0.0
    %424 = vmatprep.subr.mxu0 0.0
    %425 = vmatpush1.xpose.msra.mxu0 0.0
    %426 = vmatprep.subr.mxu0 0.0
    %427 = vmatpush1.xpose.msra.mxu0 0.0
    %428 = vmatprep.subr.mxu0 0.0
    %429 = vmatpush1.xpose.msra.mxu0 0.0
    %430 = vmatprep.subr.mxu0 0.0
    %431 = vmatpush1.xpose.msra.mxu0 0.0
    %432 = vmatprep.subr.mxu0 0.0
    %433 = vmatpush1.xpose.msra.mxu0 0.0
    %434 = vmatprep.subr.mxu0 0.0
    %435 = vmatpush1.xpose.msra.mxu0 0.0
    %436 = vmatprep.subr.mxu0 0.0
    %437 = vmatpush1.xpose.msra.mxu0 0.0
    %438 = vmatprep.subr.mxu0 0.0
    %439 = vmatpush1.xpose.msra.mxu0 0.0
    %440 = vmatprep.subr.mxu0 0.0
    %441 = vmatpush1.xpose.msra.mxu0 0.0
    %442 = vmatprep.subr.mxu0 0.0
    %443 = vmatpush1.xpose.msra.mxu0 0.0
    %444 = vmatprep.subr.mxu0 0.0
    %445 = vmatpush1.xpose.msra.mxu0 0.0
    %446 = vmatprep.subr.mxu0 0.0
    %447 = vmatpush1.xpose.msra.mxu0 0.0
    %448 = vmatprep.subr.mxu0 0.0
    %449 = vmatpush1.xpose.msra.mxu0 0.0
    %450 = vmatprep.mubr.f32.mxu0 %v125
    %451 = vmatmul.mubr.f32.gmra.mrb[0].mxu0 %v123
    %v452 = vpop.f32.mrb[0].mxu0
    %v453 = vadd.f32 %v383, %v452
    %v454 = vpop.f32.mrb[0].mxu0
    %455 = vdwg.mxu0
    %456 = vmatprep.subr.mxu0 %v42
    %457 = vmatpush1.xpose.msra.mxu0 %v41
    %458 = vmatprep.subr.mxu0 %v58
    %459 = vmatpush1.xpose.msra.mxu0 %v57
    %460 = vmatprep.subr.mxu0 %v74
    %461 = vmatpush1.xpose.msra.mxu0 %v73
    %462 = vmatprep.subr.mxu0 0.0
    %463 = vmatpush1.xpose.msra.mxu0 0.0
    %464 = vmatprep.subr.mxu0 0.0
    %465 = vmatpush1.xpose.msra.mxu0 0.0
    %466 = vmatprep.subr.mxu0 0.0
    %467 = vmatpush1.xpose.msra.mxu0 0.0
    %468 = vmatprep.subr.mxu0 0.0
    %469 = vmatpush1.xpose.msra.mxu0 0.0
    %470 = vmatprep.subr.mxu0 0.0
    %471 = vmatpush1.xpose.msra.mxu0 0.0
    %472 = vmatprep.subr.mxu0 0.0
    %473 = vmatpush1.xpose.msra.mxu0 0.0
    %474 = vmatprep.subr.mxu0 0.0
    %475 = vmatpush1.xpose.msra.mxu0 0.0
    %476 = vmatprep.subr.mxu0 0.0
    %477 = vmatpush1.xpose.msra.mxu0 0.0
    %478 = vmatprep.subr.mxu0 0.0
    %479 = vmatpush1.xpose.msra.mxu0 0.0
    %480 = vmatprep.subr.mxu0 0.0
    %481 = vmatpush1.xpose.msra.mxu0 0.0
    %482 = vmatprep.subr.mxu0 0.0
    %483 = vmatpush1.xpose.msra.mxu0 0.0
    %484 = vmatprep.subr.mxu0 0.0
    %485 = vmatpush1.xpose.msra.mxu0 0.0
    %486 = vmatprep.subr.mxu0 0.0
    %487 = vmatpush1.xpose.msra.mxu0 0.0
    %488 = vmatprep.subr.mxu0 0.0
    %489 = vmatpush1.xpose.msra.mxu0 0.0
    %490 = vmatprep.subr.mxu0 0.0
    %491 = vmatpush1.xpose.msra.mxu0 0.0
    %492 = vmatprep.subr.mxu0 0.0
    %493 = vmatpush1.xpose.msra.mxu0 0.0
    %494 = vmatprep.subr.mxu0 0.0
    %495 = vmatpush1.xpose.msra.mxu0 0.0
    %496 = vmatprep.subr.mxu0 0.0
    %497 = vmatpush1.xpose.msra.mxu0 0.0
    %498 = vmatprep.subr.mxu0 0.0
    %499 = vmatpush1.xpose.msra.mxu0 0.0
    %500 = vmatprep.subr.mxu0 0.0
    %501 = vmatpush1.xpose.msra.mxu0 0.0
    %502 = vmatprep.subr.mxu0 0.0
    %503 = vmatpush1.xpose.msra.mxu0 0.0
    %504 = vmatprep.subr.mxu0 0.0
    %505 = vmatpush1.xpose.msra.mxu0 0.0
    %506 = vmatprep.subr.mxu0 0.0
    %507 = vmatpush1.xpose.msra.mxu0 0.0
    %508 = vmatprep.subr.mxu0 0.0
    %509 = vmatpush1.xpose.msra.mxu0 0.0
    %510 = vmatprep.subr.mxu0 0.0
    %511 = vmatpush1.xpose.msra.mxu0 0.0
    %512 = vmatprep.subr.mxu0 0.0
    %513 = vmatpush1.xpose.msra.mxu0 0.0
    %514 = vmatprep.subr.mxu0 0.0
    %515 = vmatpush1.xpose.msra.mxu0 0.0
    %516 = vmatprep.subr.mxu0 0.0
    %517 = vmatpush1.xpose.msra.mxu0 0.0
    %518 = vmatprep.subr.mxu0 0.0
    %519 = vmatpush1.xpose.msra.mxu0 0.0
    %520 = vmatprep.mubr.f32.mxu0 %v141
    %521 = vmatmul.mubr.f32.gmra.mrb[0].mxu0 %v133
    %v522 = vpop.f32.mrb[0].mxu0
    %v523 = vadd.f32 %v453, %v522
    %v524 = vpop.f32.mrb[0].mxu0
    %525 = vdwg.mxu0
    %526 = vmatprep.subr.mxu0 %v44
    %527 = vmatpush1.xpose.msra.mxu0 %v43
    %528 = vmatprep.subr.mxu0 %v60
    %529 = vmatpush1.xpose.msra.mxu0 %v59
    %530 = vmatprep.subr.mxu0 %v76
    %531 = vmatpush1.xpose.msra.mxu0 %v75
    %532 = vmatprep.subr.mxu0 0.0
    %533 = vmatpush1.xpose.msra.mxu0 0.0
    %534 = vmatprep.subr.mxu0 0.0
    %535 = vmatpush1.xpose.msra.mxu0 0.0
    %536 = vmatprep.subr.mxu0 0.0
    %537 = vmatpush1.xpose.msra.mxu0 0.0
    %538 = vmatprep.subr.mxu0 0.0
    %539 = vmatpush1.xpose.msra.mxu0 0.0
    %540 = vmatprep.subr.mxu0 0.0
    %541 = vmatpush1.xpose.msra.mxu0 0.0
    %542 = vmatprep.subr.mxu0 0.0
    %543 = vmatpush1.xpose.msra.mxu0 0.0
    %544 = vmatprep.subr.mxu0 0.0
    %545 = vmatpush1.xpose.msra.mxu0 0.0
    %546 = vmatprep.subr.mxu0 0.0
    %547 = vmatpush1.xpose.msra.mxu0 0.0
    %548 = vmatprep.subr.mxu0 0.0
    %549 = vmatpush1.xpose.msra.mxu0 0.0
    %550 = vmatprep.subr.mxu0 0.0
    %551 = vmatpush1.xpose.msra.mxu0 0.0
    %552 = vmatprep.subr.mxu0 0.0
    %553 = vmatpush1.xpose.msra.mxu0 0.0
    %554 = vmatprep.subr.mxu0 0.0
    %555 = vmatpush1.xpose.msra.mxu0 0.0
    %556 = vmatprep.subr.mxu0 0.0
    %557 = vmatpush1.xpose.msra.mxu0 0.0
    %558 = vmatprep.subr.mxu0 0.0
    %559 = vmatpush1.xpose.msra.mxu0 0.0
    %560 = vmatprep.subr.mxu0 0.0
    %561 = vmatpush1.xpose.msra.mxu0 0.0
    %562 = vmatprep.subr.mxu0 0.0
    %563 = vmatpush1.xpose.msra.mxu0 0.0
    %564 = vmatprep.subr.mxu0 0.0
    %565 = vmatpush1.xpose.msra.mxu0 0.0
    %566 = vmatprep.subr.mxu0 0.0
    %567 = vmatpush1.xpose.msra.mxu0 0.0
    %568 = vmatprep.subr.mxu0 0.0
    %569 = vmatpush1.xpose.msra.mxu0 0.0
    %570 = vmatprep.subr.mxu0 0.0
    %571 = vmatpush1.xpose.msra.mxu0 0.0
    %572 = vmatprep.subr.mxu0 0.0
    %573 = vmatpush1.xpose.msra.mxu0 0.0
    %574 = vmatprep.subr.mxu0 0.0
    %575 = vmatpush1.xpose.msra.mxu0 0.0
    %576 = vmatprep.subr.mxu0 0.0
    %577 = vmatpush1.xpose.msra.mxu0 0.0
    %578 = vmatprep.subr.mxu0 0.0
    %579 = vmatpush1.xpose.msra.mxu0 0.0
    %580 = vmatprep.subr.mxu0 0.0
    %581 = vmatpush1.xpose.msra.mxu0 0.0
    %582 = vmatprep.subr.mxu0 0.0
    %583 = vmatpush1.xpose.msra.mxu0 0.0
    %584 = vmatprep.subr.mxu0 0.0
    %585 = vmatpush1.xpose.msra.mxu0 0.0
    %586 = vmatprep.subr.mxu0 0.0
    %587 = vmatpush1.xpose.msra.mxu0 0.0
    %588 = vmatprep.subr.mxu0 0.0
    %589 = vmatpush1.xpose.msra.mxu0 0.0
    %590 = vmatprep.mubr.f32.mxu0 %v142
    %591 = vmatmul.mubr.f32.gmra.mrb[0].mxu0 %v140
    %v592 = vpop.f32.mrb[0].mxu0
    %v593 = vadd.f32 %v523, %v592
    %v594 = vpop.f32.mrb[0].mxu0
    %595 = vdwg.mxu0
    %596 = vmatprep.subr.mxu0 %v46
    %597 = vmatpush1.xpose.msra.mxu0 %v45
    %598 = vmatprep.subr.mxu0 %v62
    %599 = vmatpush1.xpose.msra.mxu0 %v61
    %600 = vmatprep.subr.mxu0 %v78
    %601 = vmatpush1.xpose.msra.mxu0 %v77
    %602 = vmatprep.subr.mxu0 0.0
    %603 = vmatpush1.xpose.msra.mxu0 0.0
    %604 = vmatprep.subr.mxu0 0.0
    %605 = vmatpush1.xpose.msra.mxu0 0.0
    %606 = vmatprep.subr.mxu0 0.0
    %607 = vmatpush1.xpose.msra.mxu0 0.0
    %608 = vmatprep.subr.mxu0 0.0
    %609 = vmatpush1.xpose.msra.mxu0 0.0
    %610 = vmatprep.subr.mxu0 0.0
    %611 = vmatpush1.xpose.msra.mxu0 0.0
    %612 = vmatprep.subr.mxu0 0.0
    %613 = vmatpush1.xpose.msra.mxu0 0.0
    %614 = vmatprep.subr.mxu0 0.0
    %615 = vmatpush1.xpose.msra.mxu0 0.0
    %616 = vmatprep.subr.mxu0 0.0
    %617 = vmatpush1.xpose.msra.mxu0 0.0
    %618 = vmatprep.subr.mxu0 0.0
    %619 = vmatpush1.xpose.msra.mxu0 0.0
    %620 = vmatprep.subr.mxu0 0.0
    %621 = vmatpush1.xpose.msra.mxu0 0.0
    %622 = vmatprep.subr.mxu0 0.0
    %623 = vmatpush1.xpose.msra.mxu0 0.0
    %624 = vmatprep.subr.mxu0 0.0
    %625 = vmatpush1.xpose.msra.mxu0 0.0
    %626 = vmatprep.subr.mxu0 0.0
    %627 = vmatpush1.xpose.msra.mxu0 0.0
    %628 = vmatprep.subr.mxu0 0.0
    %629 = vmatpush1.xpose.msra.mxu0 0.0
    %630 = vmatprep.subr.mxu0 0.0
    %631 = vmatpush1.xpose.msra.mxu0 0.0
    %632 = vmatprep.subr.mxu0 0.0
    %633 = vmatpush1.xpose.msra.mxu0 0.0
    %634 = vmatprep.subr.mxu0 0.0
    %635 = vmatpush1.xpose.msra.mxu0 0.0
    %636 = vmatprep.subr.mxu0 0.0
    %637 = vmatpush1.xpose.msra.mxu0 0.0
    %638 = vmatprep.subr.mxu0 0.0
    %639 = vmatpush1.xpose.msra.mxu0 0.0
    %640 = vmatprep.subr.mxu0 0.0
    %641 = vmatpush1.xpose.msra.mxu0 0.0
    %642 = vmatprep.subr.mxu0 0.0
    %643 = vmatpush1.xpose.msra.mxu0 0.0
    %644 = vmatprep.subr.mxu0 0.0
    %645 = vmatpush1.xpose.msra.mxu0 0.0
    %646 = vmatprep.subr.mxu0 0.0
    %647 = vmatpush1.xpose.msra.mxu0 0.0
    %648 = vmatprep.subr.mxu0 0.0
    %649 = vmatpush1.xpose.msra.mxu0 0.0
    %650 = vmatprep.subr.mxu0 0.0
    %651 = vmatpush1.xpose.msra.mxu0 0.0
    %652 = vmatprep.subr.mxu0 0.0
    %653 = vmatpush1.xpose.msra.mxu0 0.0
    %654 = vmatprep.subr.mxu0 0.0
    %655 = vmatpush1.xpose.msra.mxu0 0.0
    %656 = vmatprep.subr.mxu0 0.0
    %657 = vmatpush1.xpose.msra.mxu0 0.0
    %658 = vmatprep.subr.mxu0 0.0
    %659 = vmatpush1.xpose.msra.mxu0 0.0
    %660 = vmatprep.mubr.f32.mxu0 %v158
    %661 = vmatmul.mubr.f32.gmra.mrb[0].mxu0 %v150
    %v662 = vpop.f32.mrb[0].mxu0
    %v663 = vadd.f32 %v593, %v662
    %v664 = vpop.f32.mrb[0].mxu0
    %665 = vdwg.mxu0
    %666 = vmatprep.subr.mxu0 %v48
    %667 = vmatpush1.xpose.msra.mxu0 %v47
    %668 = vmatprep.subr.mxu0 %v64
    %669 = vmatpush1.xpose.msra.mxu0 %v63
    %670 = vmatprep.subr.mxu0 %v80
    %671 = vmatpush1.xpose.msra.mxu0 %v79
    %672 = vmatprep.subr.mxu0 0.0
    %673 = vmatpush1.xpose.msra.mxu0 0.0
    %674 = vmatprep.subr.mxu0 0.0
    %675 = vmatpush1.xpose.msra.mxu0 0.0
    %676 = vmatprep.subr.mxu0 0.0
    %677 = vmatpush1.xpose.msra.mxu0 0.0
    %678 = vmatprep.subr.mxu0 0.0
    %679 = vmatpush1.xpose.msra.mxu0 0.0
    %680 = vmatprep.subr.mxu0 0.0
    %681 = vmatpush1.xpose.msra.mxu0 0.0
    %682 = vmatprep.subr.mxu0 0.0
    %683 = vmatpush1.xpose.msra.mxu0 0.0
    %684 = vmatprep.subr.mxu0 0.0
    %685 = vmatpush1.xpose.msra.mxu0 0.0
    %686 = vmatprep.subr.mxu0 0.0
    %687 = vmatpush1.xpose.msra.mxu0 0.0
    %688 = vmatprep.subr.mxu0 0.0
    %689 = vmatpush1.xpose.msra.mxu0 0.0
    %690 = vmatprep.subr.mxu0 0.0
    %691 = vmatpush1.xpose.msra.mxu0 0.0
    %692 = vmatprep.subr.mxu0 0.0
    %693 = vmatpush1.xpose.msra.mxu0 0.0
    %694 = vmatprep.subr.mxu0 0.0
    %695 = vmatpush1.xpose.msra.mxu0 0.0
    %696 = vmatprep.subr.mxu0 0.0
    %697 = vmatpush1.xpose.msra.mxu0 0.0
    %698 = vmatprep.subr.mxu0 0.0
    %699 = vmatpush1.xpose.msra.mxu0 0.0
    %700 = vmatprep.subr.mxu0 0.0
    %701 = vmatpush1.xpose.msra.mxu0 0.0
    %702 = vmatprep.subr.mxu0 0.0
    %703 = vmatpush1.xpose.msra.mxu0 0.0
    %704 = vmatprep.subr.mxu0 0.0
    %705 = vmatpush1.xpose.msra.mxu0 0.0
    %706 = vmatprep.subr.mxu0 0.0
    %707 = vmatpush1.xpose.msra.mxu0 0.0
    %708 = vmatprep.subr.mxu0 0.0
    %709 = vmatpush1.xpose.msra.mxu0 0.0
    %710 = vmatprep.subr.mxu0 0.0
    %711 = vmatpush1.xpose.msra.mxu0 0.0
    %712 = vmatprep.subr.mxu0 0.0
    %713 = vmatpush1.xpose.msra.mxu0 0.0
    %714 = vmatprep.subr.mxu0 0.0
    %715 = vmatpush1.xpose.msra.mxu0 0.0
    %716 = vmatprep.subr.mxu0 0.0
    %717 = vmatpush1.xpose.msra.mxu0 0.0
    %718 = vmatprep.subr.mxu0 0.0
    %719 = vmatpush1.xpose.msra.mxu0 0.0
    %720 = vmatprep.subr.mxu0 0.0
    %721 = vmatpush1.xpose.msra.mxu0 0.0
    %722 = vmatprep.subr.mxu0 0.0
    %723 = vmatpush1.xpose.msra.mxu0 0.0
    %724 = vmatprep.subr.mxu0 0.0
    %725 = vmatpush1.xpose.msra.mxu0 0.0
    %726 = vmatprep.subr.mxu0 0.0
    %727 = vmatpush1.xpose.msra.mxu0 0.0
    %728 = vmatprep.subr.mxu0 0.0
    %729 = vmatpush1.xpose.msra.mxu0 0.0
    %730 = vmatprep.mubr.f32.mxu0 %v159
    %731 = vmatmul.mubr.f32.gmra.mrb[0].mxu0 %v157
    %v732 = vpop.f32.mrb[0].mxu0
    %v733 = vadd.f32 %v663, %v732
    %v734 = vpop.f32.mrb[0].mxu0
    %735 = vdwg.mxu0
    %vm736 = vcmask 132096
    %737 = vst.msk [vmem:[#allocation5] sm:$0x3] %vm736, %v733
    // Predicated region
    $region18: #{frozen_cnn_forward.1} parent=1 // pred_check
      _
    $region19: #{frozen_cnn_forward.1} parent=1 // pred_check_branch
      %739 = sbr.rel (0) target = $region21
    $region20: #{frozen_cnn_forward.1} parent=1 // pred_region
      %s741 = ssub.s32 32, 32
      %742 = vsyncadd [#allocation4], %s741
      %s744 = sshll.u32 [#allocation5], 4
      %s745 = int_to_ptr.vmem [resolvable:$true] %s744
      %747 = dma.vmem_to_hbm [thread:$0]  %s745, 32, %s3, [#allocation4]
    $region21: #{frozen_cnn_forward.1} parent=1 // pred_fallthru
      _
    // Predicated region
    $region22: #{frozen_cnn_forward.1} parent=1 // pred_check
      _
    $region23: #{frozen_cnn_forward.1} parent=1 // pred_check_branch
      %749 = sbr.rel (0) target = $region25
    $region24: #{frozen_cnn_forward.1} parent=1 // pred_region
      %750 = dma.done [#allocation4], 32
    $region25: #{frozen_cnn_forward.1} parent=1 // pred_fallthru
      _
    %751 = vsyncpa [#allocation3], 1
    %752 = vsyncpa [#allocation4], 1

</llo_original>
